<compile_context>
chip_gen: v7x
topology: tpu7x:2x2x1
jax: 0.10.0
libtpu: 0.0.40
codegen_flags: <defaults>
</compile_context>

<pallas_src>
import jax
import jax.numpy as jnp
from jax.experimental import pallas as pl
from jax.experimental.pallas import tpu as pltpu

example_sentence = (
    "\nChang Choi is currently an Assistant Professor in the Department of "
    "Computer Engineering at Gachon University, Seongnam, Korea, Since 2020. "
    "\nHe received B.S., M.S. and Ph.D. degrees in Computer Engineering from "
    "Chosun University in 2005, 2007, and 2012, respectively. \nhe was a "
    "research professor at the same university. \nHe was awarded the academic "
    "awards from the graduate school of Chosun University in 2012.\n"
).split()

VOCAB_SIZE = len(example_sentence)   # 63 (matches len(example_sentence) in the module)
EMBEDDING_DIM = 32
HIDDEN = 64
CONTEXT_SIZE = 4

LANE = 128
SUBLANE = 8
NEG_BIG = -1e30     # masks padded vocab lanes out of the log-softmax


def _round_up(x, m):
    return (x + m - 1) // m * m


def cbow_kernel(idx_ref,      # SMEM [Bp, C] int32   (scalar prefetch)
                m1b_ref,      # VMEM [V+1, 1, H]     rows 0..V-1 = emb@W1, row V = b1
                w2_ref,       # VMEM [H, Vp]
                b2_ref,       # VMEM [1, Vp]         padded lanes hold -1e30
                out_ref,      # VMEM [TB, Vp]
                h_ref):       # VMEM scratch [TB, H]
    tile = pl.program_id(0)
    n_ctx = idx_ref.shape[1]          # C (static)
    tb = out_ref.shape[0]             # batch tile (static)
    bias_row = m1b_ref.shape[0] - 1   # row V holds b1

    b1 = m1b_ref[bias_row]            # [1, H]

    # Gather + accumulate the fused (emb @ W1) rows for each context window.
    # Small static unroll: tb * C dynamic row reads on the untiled leading axis.
    for b in range(tb):
        acc = b1
        for c in range(n_ctx):
            tok = idx_ref[tile * tb + b, c]
            acc = acc + m1b_ref[tok]               # [1, H]
        h_ref[pl.ds(b, 1), :] = acc

    # Layer 1 activation + layer 2 (the single remaining MXU matmul).
    h1 = jnp.maximum(h_ref[...], 0.0)                                   # [TB, H]
    logits = jnp.dot(h1, w2_ref[...],
                     preferred_element_type=jnp.float32) + b2_ref[...]  # [TB, Vp]

    # Numerically stable log-softmax over the (lane-dense, padded) vocab axis.
    m = jnp.max(logits, axis=-1, keepdims=True)
    lse = m + jnp.log(jnp.sum(jnp.exp(logits - m), axis=-1, keepdims=True))
    out_ref[...] = logits - lse


def fuse_params(emb, w1, b1, w2, b2):
    """One-time (init-time) packing of the PyTorch parameters for the kernel.

    Returns (m1b, w2_padded, b2_padded, vocab_size):
      m1b  : [V+1, 1, H]  rows 0..V-1 = emb @ W1, row V = b1 (bias folded in).
      w2p  : [H, Vp]      Vp = round_up(V, 128), zero-padded columns.
      b2p  : [1, Vp]      padded lanes set to -1e30 (masked out of softmax).
    """
    V, _ = emb.shape
    H = w1.shape[1]
    Vp = _round_up(V, LANE)
    m1b = jnp.concatenate([emb @ w1, b1], axis=0)[:, None, :]       # [V+1, 1, H]
    w2p = jnp.zeros((H, Vp), jnp.float32).at[:, :V].set(w2)
    b2p = jnp.full((1, Vp), NEG_BIG, jnp.float32).at[:, :V].set(b2)
    return m1b, w2p, b2p, V


def cbow_forward(indices, m1b, w2p, b2p, vocab_size, *, tile_b=8):
    """indices: int32 [C] or [B, C]; returns log-probabilities [B, V] float32
    ([1, V] for a single context, matching the PyTorch module)."""
    indices = jnp.asarray(indices, jnp.int32)
    if indices.ndim == 1:
        indices = indices[None, :]
    B, C = indices.shape
    Vtot, _, H = m1b.shape
    Vp = w2p.shape[1]

    tb = _round_up(min(tile_b, B), SUBLANE)      # sublane-aligned batch tile
    Bp = _round_up(B, tb)
    if Bp != B:
        indices = jnp.zeros((Bp, C), jnp.int32).at[:B].set(indices)

    out = pl.pallas_call(
        cbow_kernel,
        out_shape=jax.ShapeDtypeStruct((Bp, Vp), jnp.float32),
        grid_spec=pltpu.PrefetchScalarGridSpec(
            num_scalar_prefetch=1,                      # indices -> SMEM
            grid=(Bp // tb,),
            in_specs=[
                # Weights: constant block index => resident in VMEM across grid.
                pl.BlockSpec((Vtot, 1, H), lambda i, idx: (0, 0, 0)),
                pl.BlockSpec((H, Vp), lambda i, idx: (0, 0)),
                pl.BlockSpec((1, Vp), lambda i, idx: (0, 0)),
            ],
            out_specs=pl.BlockSpec((tb, Vp), lambda i, idx: (i, 0)),
            scratch_shapes=[pltpu.VMEM((tb, H), jnp.float32)],
        ),
        compiler_params=pltpu.CompilerParams(
            dimension_semantics=("parallel",),          # batch tiles independent
        ),
    )(indices, m1b, w2p, b2p)

    return out[:B, :vocab_size]


def init_params(key, vocab_size, embedding_dim, hidden):
    """Deterministic init mimicking the PyTorch module's parameter shapes.
    Linear weights are stored transposed vs. PyTorch (x @ W + b convention)."""
    k_emb, k_w1, k_b1, k_w2, k_b2 = jax.random.split(key, 5)
    emb = jax.random.normal(k_emb, (vocab_size, embedding_dim), jnp.float32)
    bound1 = 1.0 / jnp.sqrt(embedding_dim)
    w1 = jax.random.uniform(k_w1, (embedding_dim, hidden), jnp.float32, -bound1, bound1)
    b1 = jax.random.uniform(k_b1, (1, hidden), jnp.float32, -bound1, bound1)
    bound2 = 1.0 / jnp.sqrt(hidden)
    w2 = jax.random.uniform(k_w2, (hidden, vocab_size), jnp.float32, -bound2, bound2)
    b2 = jax.random.uniform(k_b2, (1, vocab_size), jnp.float32, -bound2, bound2)
    return emb, w1, b1, w2, b2


def cbow_reference(indices, emb, w1, b1, w2, b2):
    """Pure-JAX reference matching the PyTorch forward (unfused math)."""
    indices = jnp.asarray(indices, jnp.int32)
    if indices.ndim == 1:
        indices = indices[None, :]
    h0 = jnp.sum(emb[indices], axis=1)                  # [B, E]
    h1 = jnp.maximum(h0 @ w1 + b1, 0.0)                 # [B, H]
    logits = h1 @ w2 + b2                               # [B, V]
    return jax.nn.log_softmax(logits, axis=-1)


if __name__ == "__main__":
    key = jax.random.PRNGKey(0)
    k_params, k_idx = jax.random.split(key)
    emb, w1, b1, w2, b2 = init_params(k_params, VOCAB_SIZE, EMBEDDING_DIM, HIDDEN)
    fused = fuse_params(emb, w1, b1, w2, b2)

    # A small batch of context windows (2 words either side of the target).
    B = 8
    batch_indices = jax.random.randint(k_idx, (B, CONTEXT_SIZE), 0, VOCAB_SIZE, jnp.int32)

    out = jax.block_until_ready(cbow_forward(batch_indices, *fused))
    ref = cbow_reference(batch_indices, emb, w1, b1, w2, b2)
    assert out.shape == (B, VOCAB_SIZE)
    assert jnp.allclose(out, ref, atol=2e-4, rtol=2e-4)

    # Single-context case exactly matching the PyTorch module's forward ([1, V]).
    out1 = jax.block_until_ready(cbow_forward(batch_indices[0], *fused))
    ref1 = cbow_reference(batch_indices[0], emb, w1, b1, w2, b2)
    assert out1.shape == (1, VOCAB_SIZE)
    assert jnp.allclose(out1, ref1, atol=2e-4, rtol=2e-4)

    print("KERNEL_OK")
</pallas_src>

<mosaic_0001>
module attributes {stable_mosaic.version = 11 : i64} {
  func.func @cbow_kernel(%arg0: i32, %arg1: memref<8x4xi32, #tpu.memory_space<smem>>, %arg2: memref<64x1x64xf32, #tpu.memory_space<vmem>>, %arg3: memref<64x128xf32, #tpu.memory_space<vmem>>, %arg4: memref<1x128xf32, #tpu.memory_space<vmem>>, %arg5: memref<8x128xf32, #tpu.memory_space<vmem>>, %arg6: memref<8x64xf32, #tpu.memory_space<vmem>>) attributes {dimension_semantics = [#tpu.dimension_semantics<parallel>], iteration_bounds = array<i64: 1>, scalar_prefetch = 1 : i64, scratch_operands = 1 : i64, tpu.core_type = #tpu.core_type<tc>, window_params = [{pipeline_mode = #tpu.pipeline_mode<synchronous>, transform_indices = @transform_0, window_bounds = array<i64: 64, 1, 64>}, {pipeline_mode = #tpu.pipeline_mode<synchronous>, transform_indices = @transform_1, window_bounds = array<i64: 64, 128>}, {pipeline_mode = #tpu.pipeline_mode<synchronous>, transform_indices = @transform_2, window_bounds = array<i64: 1, 128>}, {transform_indices = @transform_3, window_bounds = array<i64: 8, 128>}]} {
    %c63 = arith.constant 63 : index
    %c0 = arith.constant 0 : index
    %c0_0 = arith.constant 0 : index
    %0 = vector.load %arg2[%c63, %c0, %c0_0] : memref<64x1x64xf32, #tpu.memory_space<vmem>>, vector<1x1x64xf32>
    %1 = vector.shape_cast %0 : vector<1x1x64xf32> to vector<1x64xf32>
    %c8_i32 = arith.constant 8 : i32
    %2 = arith.muli %arg0, %c8_i32 : i32
    %c0_i32 = arith.constant 0 : i32
    %3 = arith.addi %2, %c0_i32 : i32
    %4 = arith.index_cast %3 : i32 to index
    %c0_1 = arith.constant 0 : index
    %5 = memref.load %arg1[%4, %c0_1] : memref<8x4xi32, #tpu.memory_space<smem>>
    %6 = arith.index_cast %5 : i32 to index
    %c0_2 = arith.constant 0 : index
    %c0_3 = arith.constant 0 : index
    %7 = vector.load %arg2[%6, %c0_2, %c0_3] : memref<64x1x64xf32, #tpu.memory_space<vmem>>, vector<1x1x64xf32>
    %8 = vector.shape_cast %7 : vector<1x1x64xf32> to vector<1x64xf32>
    %9 = arith.addf %1, %8 : vector<1x64xf32>
    %c8_i32_4 = arith.constant 8 : i32
    %10 = arith.muli %arg0, %c8_i32_4 : i32
    %c0_i32_5 = arith.constant 0 : i32
    %11 = arith.addi %10, %c0_i32_5 : i32
    %12 = arith.index_cast %11 : i32 to index
    %c1 = arith.constant 1 : index
    %13 = memref.load %arg1[%12, %c1] : memref<8x4xi32, #tpu.memory_space<smem>>
    %14 = arith.index_cast %13 : i32 to index
    %c0_6 = arith.constant 0 : index
    %c0_7 = arith.constant 0 : index
    %15 = vector.load %arg2[%14, %c0_6, %c0_7] : memref<64x1x64xf32, #tpu.memory_space<vmem>>, vector<1x1x64xf32>
    %16 = vector.shape_cast %15 : vector<1x1x64xf32> to vector<1x64xf32>
    %17 = arith.addf %9, %16 : vector<1x64xf32>
    %c8_i32_8 = arith.constant 8 : i32
    %18 = arith.muli %arg0, %c8_i32_8 : i32
    %c0_i32_9 = arith.constant 0 : i32
    %19 = arith.addi %18, %c0_i32_9 : i32
    %20 = arith.index_cast %19 : i32 to index
    %c2 = arith.constant 2 : index
    %21 = memref.load %arg1[%20, %c2] : memref<8x4xi32, #tpu.memory_space<smem>>
    %22 = arith.index_cast %21 : i32 to index
    %c0_10 = arith.constant 0 : index
    %c0_11 = arith.constant 0 : index
    %23 = vector.load %arg2[%22, %c0_10, %c0_11] : memref<64x1x64xf32, #tpu.memory_space<vmem>>, vector<1x1x64xf32>
    %24 = vector.shape_cast %23 : vector<1x1x64xf32> to vector<1x64xf32>
    %25 = arith.addf %17, %24 : vector<1x64xf32>
    %c8_i32_12 = arith.constant 8 : i32
    %26 = arith.muli %arg0, %c8_i32_12 : i32
    %c0_i32_13 = arith.constant 0 : i32
    %27 = arith.addi %26, %c0_i32_13 : i32
    %28 = arith.index_cast %27 : i32 to index
    %c3 = arith.constant 3 : index
    %29 = memref.load %arg1[%28, %c3] : memref<8x4xi32, #tpu.memory_space<smem>>
    %30 = arith.index_cast %29 : i32 to index
    %c0_14 = arith.constant 0 : index
    %c0_15 = arith.constant 0 : index
    %31 = vector.load %arg2[%30, %c0_14, %c0_15] : memref<64x1x64xf32, #tpu.memory_space<vmem>>, vector<1x1x64xf32>
    %32 = vector.shape_cast %31 : vector<1x1x64xf32> to vector<1x64xf32>
    %33 = arith.addf %25, %32 : vector<1x64xf32>
    %c0_16 = arith.constant 0 : index
    %c0_17 = arith.constant 0 : index
    %34 = vector.load %arg6[%c0_16, %c0_17] : memref<8x64xf32, #tpu.memory_space<vmem>>, vector<1x64xf32>
    tpu.vector_store %arg6[%c0_16, %c0_17], %33 {strides = array<i32>} : memref<8x64xf32, #tpu.memory_space<vmem>>, vector<1x64xf32>,
    %c8_i32_18 = arith.constant 8 : i32
    %35 = arith.muli %arg0, %c8_i32_18 : i32
    %c1_i32 = arith.constant 1 : i32
    %36 = arith.addi %35, %c1_i32 : i32
    %37 = arith.index_cast %36 : i32 to index
    %c0_19 = arith.constant 0 : index
    %38 = memref.load %arg1[%37, %c0_19] : memref<8x4xi32, #tpu.memory_space<smem>>
    %39 = arith.index_cast %38 : i32 to index
    %c0_20 = arith.constant 0 : index
    %c0_21 = arith.constant 0 : index
    %40 = vector.load %arg2[%39, %c0_20, %c0_21] : memref<64x1x64xf32, #tpu.memory_space<vmem>>, vector<1x1x64xf32>
    %41 = vector.shape_cast %40 : vector<1x1x64xf32> to vector<1x64xf32>
    %42 = arith.addf %1, %41 : vector<1x64xf32>
    %c8_i32_22 = arith.constant 8 : i32
    %43 = arith.muli %arg0, %c8_i32_22 : i32
    %c1_i32_23 = arith.constant 1 : i32
    %44 = arith.addi %43, %c1_i32_23 : i32
    %45 = arith.index_cast %44 : i32 to index
    %c1_24 = arith.constant 1 : index
    %46 = memref.load %arg1[%45, %c1_24] : memref<8x4xi32, #tpu.memory_space<smem>>
    %47 = arith.index_cast %46 : i32 to index
    %c0_25 = arith.constant 0 : index
    %c0_26 = arith.constant 0 : index
    %48 = vector.load %arg2[%47, %c0_25, %c0_26] : memref<64x1x64xf32, #tpu.memory_space<vmem>>, vector<1x1x64xf32>
    %49 = vector.shape_cast %48 : vector<1x1x64xf32> to vector<1x64xf32>
    %50 = arith.addf %42, %49 : vector<1x64xf32>
    %c8_i32_27 = arith.constant 8 : i32
    %51 = arith.muli %arg0, %c8_i32_27 : i32
    %c1_i32_28 = arith.constant 1 : i32
    %52 = arith.addi %51, %c1_i32_28 : i32
    %53 = arith.index_cast %52 : i32 to index
    %c2_29 = arith.constant 2 : index
    %54 = memref.load %arg1[%53, %c2_29] : memref<8x4xi32, #tpu.memory_space<smem>>
    %55 = arith.index_cast %54 : i32 to index
    %c0_30 = arith.constant 0 : index
    %c0_31 = arith.constant 0 : index
    %56 = vector.load %arg2[%55, %c0_30, %c0_31] : memref<64x1x64xf32, #tpu.memory_space<vmem>>, vector<1x1x64xf32>
    %57 = vector.shape_cast %56 : vector<1x1x64xf32> to vector<1x64xf32>
    %58 = arith.addf %50, %57 : vector<1x64xf32>
    %c8_i32_32 = arith.constant 8 : i32
    %59 = arith.muli %arg0, %c8_i32_32 : i32
    %c1_i32_33 = arith.constant 1 : i32
    %60 = arith.addi %59, %c1_i32_33 : i32
    %61 = arith.index_cast %60 : i32 to index
    %c3_34 = arith.constant 3 : index
    %62 = memref.load %arg1[%61, %c3_34] : memref<8x4xi32, #tpu.memory_space<smem>>
    %63 = arith.index_cast %62 : i32 to index
    %c0_35 = arith.constant 0 : index
    %c0_36 = arith.constant 0 : index
    %64 = vector.load %arg2[%63, %c0_35, %c0_36] : memref<64x1x64xf32, #tpu.memory_space<vmem>>, vector<1x1x64xf32>
    %65 = vector.shape_cast %64 : vector<1x1x64xf32> to vector<1x64xf32>
    %66 = arith.addf %58, %65 : vector<1x64xf32>
    %c1_37 = arith.constant 1 : index
    %c0_38 = arith.constant 0 : index
    %67 = vector.load %arg6[%c1_37, %c0_38] : memref<8x64xf32, #tpu.memory_space<vmem>>, vector<1x64xf32>
    tpu.vector_store %arg6[%c1_37, %c0_38], %66 {strides = array<i32>} : memref<8x64xf32, #tpu.memory_space<vmem>>, vector<1x64xf32>,
    %c8_i32_39 = arith.constant 8 : i32
    %68 = arith.muli %arg0, %c8_i32_39 : i32
    %c2_i32 = arith.constant 2 : i32
    %69 = arith.addi %68, %c2_i32 : i32
    %70 = arith.index_cast %69 : i32 to index
    %c0_40 = arith.constant 0 : index
    %71 = memref.load %arg1[%70, %c0_40] : memref<8x4xi32, #tpu.memory_space<smem>>
    %72 = arith.index_cast %71 : i32 to index
    %c0_41 = arith.constant 0 : index
    %c0_42 = arith.constant 0 : index
    %73 = vector.load %arg2[%72, %c0_41, %c0_42] : memref<64x1x64xf32, #tpu.memory_space<vmem>>, vector<1x1x64xf32>
    %74 = vector.shape_cast %73 : vector<1x1x64xf32> to vector<1x64xf32>
    %75 = arith.addf %1, %74 : vector<1x64xf32>
    %c8_i32_43 = arith.constant 8 : i32
    %76 = arith.muli %arg0, %c8_i32_43 : i32
    %c2_i32_44 = arith.constant 2 : i32
    %77 = arith.addi %76, %c2_i32_44 : i32
    %78 = arith.index_cast %77 : i32 to index
    %c1_45 = arith.constant 1 : index
    %79 = memref.load %arg1[%78, %c1_45] : memref<8x4xi32, #tpu.memory_space<smem>>
    %80 = arith.index_cast %79 : i32 to index
    %c0_46 = arith.constant 0 : index
    %c0_47 = arith.constant 0 : index
    %81 = vector.load %arg2[%80, %c0_46, %c0_47] : memref<64x1x64xf32, #tpu.memory_space<vmem>>, vector<1x1x64xf32>
    %82 = vector.shape_cast %81 : vector<1x1x64xf32> to vector<1x64xf32>
    %83 = arith.addf %75, %82 : vector<1x64xf32>
    %c8_i32_48 = arith.constant 8 : i32
    %84 = arith.muli %arg0, %c8_i32_48 : i32
    %c2_i32_49 = arith.constant 2 : i32
    %85 = arith.addi %84, %c2_i32_49 : i32
    %86 = arith.index_cast %85 : i32 to index
    %c2_50 = arith.constant 2 : index
    %87 = memref.load %arg1[%86, %c2_50] : memref<8x4xi32, #tpu.memory_space<smem>>
    %88 = arith.index_cast %87 : i32 to index
    %c0_51 = arith.constant 0 : index
    %c0_52 = arith.constant 0 : index
    %89 = vector.load %arg2[%88, %c0_51, %c0_52] : memref<64x1x64xf32, #tpu.memory_space<vmem>>, vector<1x1x64xf32>
    %90 = vector.shape_cast %89 : vector<1x1x64xf32> to vector<1x64xf32>
    %91 = arith.addf %83, %90 : vector<1x64xf32>
    %c8_i32_53 = arith.constant 8 : i32
    %92 = arith.muli %arg0, %c8_i32_53 : i32
    %c2_i32_54 = arith.constant 2 : i32
    %93 = arith.addi %92, %c2_i32_54 : i32
    %94 = arith.index_cast %93 : i32 to index
    %c3_55 = arith.constant 3 : index
    %95 = memref.load %arg1[%94, %c3_55] : memref<8x4xi32, #tpu.memory_space<smem>>
    %96 = arith.index_cast %95 : i32 to index
    %c0_56 = arith.constant 0 : index
    %c0_57 = arith.constant 0 : index
    %97 = vector.load %arg2[%96, %c0_56, %c0_57] : memref<64x1x64xf32, #tpu.memory_space<vmem>>, vector<1x1x64xf32>
    %98 = vector.shape_cast %97 : vector<1x1x64xf32> to vector<1x64xf32>
    %99 = arith.addf %91, %98 : vector<1x64xf32>
    %c2_58 = arith.constant 2 : index
    %c0_59 = arith.constant 0 : index
    %100 = vector.load %arg6[%c2_58, %c0_59] : memref<8x64xf32, #tpu.memory_space<vmem>>, vector<1x64xf32>
    tpu.vector_store %arg6[%c2_58, %c0_59], %99 {strides = array<i32>} : memref<8x64xf32, #tpu.memory_space<vmem>>, vector<1x64xf32>,
    %c8_i32_60 = arith.constant 8 : i32
    %101 = arith.muli %arg0, %c8_i32_60 : i32
    %c3_i32 = arith.constant 3 : i32
    %102 = arith.addi %101, %c3_i32 : i32
    %103 = arith.index_cast %102 : i32 to index
    %c0_61 = arith.constant 0 : index
    %104 = memref.load %arg1[%103, %c0_61] : memref<8x4xi32, #tpu.memory_space<smem>>
    %105 = arith.index_cast %104 : i32 to index
    %c0_62 = arith.constant 0 : index
    %c0_63 = arith.constant 0 : index
    %106 = vector.load %arg2[%105, %c0_62, %c0_63] : memref<64x1x64xf32, #tpu.memory_space<vmem>>, vector<1x1x64xf32>
    %107 = vector.shape_cast %106 : vector<1x1x64xf32> to vector<1x64xf32>
    %108 = arith.addf %1, %107 : vector<1x64xf32>
    %c8_i32_64 = arith.constant 8 : i32
    %109 = arith.muli %arg0, %c8_i32_64 : i32
    %c3_i32_65 = arith.constant 3 : i32
    %110 = arith.addi %109, %c3_i32_65 : i32
    %111 = arith.index_cast %110 : i32 to index
    %c1_66 = arith.constant 1 : index
    %112 = memref.load %arg1[%111, %c1_66] : memref<8x4xi32, #tpu.memory_space<smem>>
    %113 = arith.index_cast %112 : i32 to index
    %c0_67 = arith.constant 0 : index
    %c0_68 = arith.constant 0 : index
    %114 = vector.load %arg2[%113, %c0_67, %c0_68] : memref<64x1x64xf32, #tpu.memory_space<vmem>>, vector<1x1x64xf32>
    %115 = vector.shape_cast %114 : vector<1x1x64xf32> to vector<1x64xf32>
    %116 = arith.addf %108, %115 : vector<1x64xf32>
    %c8_i32_69 = arith.constant 8 : i32
    %117 = arith.muli %arg0, %c8_i32_69 : i32
    %c3_i32_70 = arith.constant 3 : i32
    %118 = arith.addi %117, %c3_i32_70 : i32
    %119 = arith.index_cast %118 : i32 to index
    %c2_71 = arith.constant 2 : index
    %120 = memref.load %arg1[%119, %c2_71] : memref<8x4xi32, #tpu.memory_space<smem>>
    %121 = arith.index_cast %120 : i32 to index
    %c0_72 = arith.constant 0 : index
    %c0_73 = arith.constant 0 : index
    %122 = vector.load %arg2[%121, %c0_72, %c0_73] : memref<64x1x64xf32, #tpu.memory_space<vmem>>, vector<1x1x64xf32>
    %123 = vector.shape_cast %122 : vector<1x1x64xf32> to vector<1x64xf32>
    %124 = arith.addf %116, %123 : vector<1x64xf32>
    %c8_i32_74 = arith.constant 8 : i32
    %125 = arith.muli %arg0, %c8_i32_74 : i32
    %c3_i32_75 = arith.constant 3 : i32
    %126 = arith.addi %125, %c3_i32_75 : i32
    %127 = arith.index_cast %126 : i32 to index
    %c3_76 = arith.constant 3 : index
    %128 = memref.load %arg1[%127, %c3_76] : memref<8x4xi32, #tpu.memory_space<smem>>
    %129 = arith.index_cast %128 : i32 to index
    %c0_77 = arith.constant 0 : index
    %c0_78 = arith.constant 0 : index
    %130 = vector.load %arg2[%129, %c0_77, %c0_78] : memref<64x1x64xf32, #tpu.memory_space<vmem>>, vector<1x1x64xf32>
    %131 = vector.shape_cast %130 : vector<1x1x64xf32> to vector<1x64xf32>
    %132 = arith.addf %124, %131 : vector<1x64xf32>
    %c3_79 = arith.constant 3 : index
    %c0_80 = arith.constant 0 : index
    %133 = vector.load %arg6[%c3_79, %c0_80] : memref<8x64xf32, #tpu.memory_space<vmem>>, vector<1x64xf32>
    tpu.vector_store %arg6[%c3_79, %c0_80], %132 {strides = array<i32>} : memref<8x64xf32, #tpu.memory_space<vmem>>, vector<1x64xf32>,
    %c8_i32_81 = arith.constant 8 : i32
    %134 = arith.muli %arg0, %c8_i32_81 : i32
    %c4_i32 = arith.constant 4 : i32
    %135 = arith.addi %134, %c4_i32 : i32
    %136 = arith.index_cast %135 : i32 to index
    %c0_82 = arith.constant 0 : index
    %137 = memref.load %arg1[%136, %c0_82] : memref<8x4xi32, #tpu.memory_space<smem>>
    %138 = arith.index_cast %137 : i32 to index
    %c0_83 = arith.constant 0 : index
    %c0_84 = arith.constant 0 : index
    %139 = vector.load %arg2[%138, %c0_83, %c0_84] : memref<64x1x64xf32, #tpu.memory_space<vmem>>, vector<1x1x64xf32>
    %140 = vector.shape_cast %139 : vector<1x1x64xf32> to vector<1x64xf32>
    %141 = arith.addf %1, %140 : vector<1x64xf32>
    %c8_i32_85 = arith.constant 8 : i32
    %142 = arith.muli %arg0, %c8_i32_85 : i32
    %c4_i32_86 = arith.constant 4 : i32
    %143 = arith.addi %142, %c4_i32_86 : i32
    %144 = arith.index_cast %143 : i32 to index
    %c1_87 = arith.constant 1 : index
    %145 = memref.load %arg1[%144, %c1_87] : memref<8x4xi32, #tpu.memory_space<smem>>
    %146 = arith.index_cast %145 : i32 to index
    %c0_88 = arith.constant 0 : index
    %c0_89 = arith.constant 0 : index
    %147 = vector.load %arg2[%146, %c0_88, %c0_89] : memref<64x1x64xf32, #tpu.memory_space<vmem>>, vector<1x1x64xf32>
    %148 = vector.shape_cast %147 : vector<1x1x64xf32> to vector<1x64xf32>
    %149 = arith.addf %141, %148 : vector<1x64xf32>
    %c8_i32_90 = arith.constant 8 : i32
    %150 = arith.muli %arg0, %c8_i32_90 : i32
    %c4_i32_91 = arith.constant 4 : i32
    %151 = arith.addi %150, %c4_i32_91 : i32
    %152 = arith.index_cast %151 : i32 to index
    %c2_92 = arith.constant 2 : index
    %153 = memref.load %arg1[%152, %c2_92] : memref<8x4xi32, #tpu.memory_space<smem>>
    %154 = arith.index_cast %153 : i32 to index
    %c0_93 = arith.constant 0 : index
    %c0_94 = arith.constant 0 : index
    %155 = vector.load %arg2[%154, %c0_93, %c0_94] : memref<64x1x64xf32, #tpu.memory_space<vmem>>, vector<1x1x64xf32>
    %156 = vector.shape_cast %155 : vector<1x1x64xf32> to vector<1x64xf32>
    %157 = arith.addf %149, %156 : vector<1x64xf32>
    %c8_i32_95 = arith.constant 8 : i32
    %158 = arith.muli %arg0, %c8_i32_95 : i32
    %c4_i32_96 = arith.constant 4 : i32
    %159 = arith.addi %158, %c4_i32_96 : i32
    %160 = arith.index_cast %159 : i32 to index
    %c3_97 = arith.constant 3 : index
    %161 = memref.load %arg1[%160, %c3_97] : memref<8x4xi32, #tpu.memory_space<smem>>
    %162 = arith.index_cast %161 : i32 to index
    %c0_98 = arith.constant 0 : index
    %c0_99 = arith.constant 0 : index
    %163 = vector.load %arg2[%162, %c0_98, %c0_99] : memref<64x1x64xf32, #tpu.memory_space<vmem>>, vector<1x1x64xf32>
    %164 = vector.shape_cast %163 : vector<1x1x64xf32> to vector<1x64xf32>
    %165 = arith.addf %157, %164 : vector<1x64xf32>
    %c4 = arith.constant 4 : index
    %c0_100 = arith.constant 0 : index
    %166 = vector.load %arg6[%c4, %c0_100] : memref<8x64xf32, #tpu.memory_space<vmem>>, vector<1x64xf32>
    tpu.vector_store %arg6[%c4, %c0_100], %165 {strides = array<i32>} : memref<8x64xf32, #tpu.memory_space<vmem>>, vector<1x64xf32>,
    %c8_i32_101 = arith.constant 8 : i32
    %167 = arith.muli %arg0, %c8_i32_101 : i32
    %c5_i32 = arith.constant 5 : i32
    %168 = arith.addi %167, %c5_i32 : i32
    %169 = arith.index_cast %168 : i32 to index
    %c0_102 = arith.constant 0 : index
    %170 = memref.load %arg1[%169, %c0_102] : memref<8x4xi32, #tpu.memory_space<smem>>
    %171 = arith.index_cast %170 : i32 to index
    %c0_103 = arith.constant 0 : index
    %c0_104 = arith.constant 0 : index
    %172 = vector.load %arg2[%171, %c0_103, %c0_104] : memref<64x1x64xf32, #tpu.memory_space<vmem>>, vector<1x1x64xf32>
    %173 = vector.shape_cast %172 : vector<1x1x64xf32> to vector<1x64xf32>
    %174 = arith.addf %1, %173 : vector<1x64xf32>
    %c8_i32_105 = arith.constant 8 : i32
    %175 = arith.muli %arg0, %c8_i32_105 : i32
    %c5_i32_106 = arith.constant 5 : i32
    %176 = arith.addi %175, %c5_i32_106 : i32
    %177 = arith.index_cast %176 : i32 to index
    %c1_107 = arith.constant 1 : index
    %178 = memref.load %arg1[%177, %c1_107] : memref<8x4xi32, #tpu.memory_space<smem>>
    %179 = arith.index_cast %178 : i32 to index
    %c0_108 = arith.constant 0 : index
    %c0_109 = arith.constant 0 : index
    %180 = vector.load %arg2[%179, %c0_108, %c0_109] : memref<64x1x64xf32, #tpu.memory_space<vmem>>, vector<1x1x64xf32>
    %181 = vector.shape_cast %180 : vector<1x1x64xf32> to vector<1x64xf32>
    %182 = arith.addf %174, %181 : vector<1x64xf32>
    %c8_i32_110 = arith.constant 8 : i32
    %183 = arith.muli %arg0, %c8_i32_110 : i32
    %c5_i32_111 = arith.constant 5 : i32
    %184 = arith.addi %183, %c5_i32_111 : i32
    %185 = arith.index_cast %184 : i32 to index
    %c2_112 = arith.constant 2 : index
    %186 = memref.load %arg1[%185, %c2_112] : memref<8x4xi32, #tpu.memory_space<smem>>
    %187 = arith.index_cast %186 : i32 to index
    %c0_113 = arith.constant 0 : index
    %c0_114 = arith.constant 0 : index
    %188 = vector.load %arg2[%187, %c0_113, %c0_114] : memref<64x1x64xf32, #tpu.memory_space<vmem>>, vector<1x1x64xf32>
    %189 = vector.shape_cast %188 : vector<1x1x64xf32> to vector<1x64xf32>
    %190 = arith.addf %182, %189 : vector<1x64xf32>
    %c8_i32_115 = arith.constant 8 : i32
    %191 = arith.muli %arg0, %c8_i32_115 : i32
    %c5_i32_116 = arith.constant 5 : i32
    %192 = arith.addi %191, %c5_i32_116 : i32
    %193 = arith.index_cast %192 : i32 to index
    %c3_117 = arith.constant 3 : index
    %194 = memref.load %arg1[%193, %c3_117] : memref<8x4xi32, #tpu.memory_space<smem>>
    %195 = arith.index_cast %194 : i32 to index
    %c0_118 = arith.constant 0 : index
    %c0_119 = arith.constant 0 : index
    %196 = vector.load %arg2[%195, %c0_118, %c0_119] : memref<64x1x64xf32, #tpu.memory_space<vmem>>, vector<1x1x64xf32>
    %197 = vector.shape_cast %196 : vector<1x1x64xf32> to vector<1x64xf32>
    %198 = arith.addf %190, %197 : vector<1x64xf32>
    %c5 = arith.constant 5 : index
    %c0_120 = arith.constant 0 : index
    %199 = vector.load %arg6[%c5, %c0_120] : memref<8x64xf32, #tpu.memory_space<vmem>>, vector<1x64xf32>
    tpu.vector_store %arg6[%c5, %c0_120], %198 {strides = array<i32>} : memref<8x64xf32, #tpu.memory_space<vmem>>, vector<1x64xf32>,
    %c8_i32_121 = arith.constant 8 : i32
    %200 = arith.muli %arg0, %c8_i32_121 : i32
    %c6_i32 = arith.constant 6 : i32
    %201 = arith.addi %200, %c6_i32 : i32
    %202 = arith.index_cast %201 : i32 to index
    %c0_122 = arith.constant 0 : index
    %203 = memref.load %arg1[%202, %c0_122] : memref<8x4xi32, #tpu.memory_space<smem>>
    %204 = arith.index_cast %203 : i32 to index
    %c0_123 = arith.constant 0 : index
    %c0_124 = arith.constant 0 : index
    %205 = vector.load %arg2[%204, %c0_123, %c0_124] : memref<64x1x64xf32, #tpu.memory_space<vmem>>, vector<1x1x64xf32>
    %206 = vector.shape_cast %205 : vector<1x1x64xf32> to vector<1x64xf32>
    %207 = arith.addf %1, %206 : vector<1x64xf32>
    %c8_i32_125 = arith.constant 8 : i32
    %208 = arith.muli %arg0, %c8_i32_125 : i32
    %c6_i32_126 = arith.constant 6 : i32
    %209 = arith.addi %208, %c6_i32_126 : i32
    %210 = arith.index_cast %209 : i32 to index
    %c1_127 = arith.constant 1 : index
    %211 = memref.load %arg1[%210, %c1_127] : memref<8x4xi32, #tpu.memory_space<smem>>
    %212 = arith.index_cast %211 : i32 to index
    %c0_128 = arith.constant 0 : index
    %c0_129 = arith.constant 0 : index
    %213 = vector.load %arg2[%212, %c0_128, %c0_129] : memref<64x1x64xf32, #tpu.memory_space<vmem>>, vector<1x1x64xf32>
    %214 = vector.shape_cast %213 : vector<1x1x64xf32> to vector<1x64xf32>
    %215 = arith.addf %207, %214 : vector<1x64xf32>
    %c8_i32_130 = arith.constant 8 : i32
    %216 = arith.muli %arg0, %c8_i32_130 : i32
    %c6_i32_131 = arith.constant 6 : i32
    %217 = arith.addi %216, %c6_i32_131 : i32
    %218 = arith.index_cast %217 : i32 to index
    %c2_132 = arith.constant 2 : index
    %219 = memref.load %arg1[%218, %c2_132] : memref<8x4xi32, #tpu.memory_space<smem>>
    %220 = arith.index_cast %219 : i32 to index
    %c0_133 = arith.constant 0 : index
    %c0_134 = arith.constant 0 : index
    %221 = vector.load %arg2[%220, %c0_133, %c0_134] : memref<64x1x64xf32, #tpu.memory_space<vmem>>, vector<1x1x64xf32>
    %222 = vector.shape_cast %221 : vector<1x1x64xf32> to vector<1x64xf32>
    %223 = arith.addf %215, %222 : vector<1x64xf32>
    %c8_i32_135 = arith.constant 8 : i32
    %224 = arith.muli %arg0, %c8_i32_135 : i32
    %c6_i32_136 = arith.constant 6 : i32
    %225 = arith.addi %224, %c6_i32_136 : i32
    %226 = arith.index_cast %225 : i32 to index
    %c3_137 = arith.constant 3 : index
    %227 = memref.load %arg1[%226, %c3_137] : memref<8x4xi32, #tpu.memory_space<smem>>
    %228 = arith.index_cast %227 : i32 to index
    %c0_138 = arith.constant 0 : index
    %c0_139 = arith.constant 0 : index
    %229 = vector.load %arg2[%228, %c0_138, %c0_139] : memref<64x1x64xf32, #tpu.memory_space<vmem>>, vector<1x1x64xf32>
    %230 = vector.shape_cast %229 : vector<1x1x64xf32> to vector<1x64xf32>
    %231 = arith.addf %223, %230 : vector<1x64xf32>
    %c6 = arith.constant 6 : index
    %c0_140 = arith.constant 0 : index
    %232 = vector.load %arg6[%c6, %c0_140] : memref<8x64xf32, #tpu.memory_space<vmem>>, vector<1x64xf32>
    tpu.vector_store %arg6[%c6, %c0_140], %231 {strides = array<i32>} : memref<8x64xf32, #tpu.memory_space<vmem>>, vector<1x64xf32>,
    %c8_i32_141 = arith.constant 8 : i32
    %233 = arith.muli %arg0, %c8_i32_141 : i32
    %c7_i32 = arith.constant 7 : i32
    %234 = arith.addi %233, %c7_i32 : i32
    %235 = arith.index_cast %234 : i32 to index
    %c0_142 = arith.constant 0 : index
    %236 = memref.load %arg1[%235, %c0_142] : memref<8x4xi32, #tpu.memory_space<smem>>
    %237 = arith.index_cast %236 : i32 to index
    %c0_143 = arith.constant 0 : index
    %c0_144 = arith.constant 0 : index
    %238 = vector.load %arg2[%237, %c0_143, %c0_144] : memref<64x1x64xf32, #tpu.memory_space<vmem>>, vector<1x1x64xf32>
    %239 = vector.shape_cast %238 : vector<1x1x64xf32> to vector<1x64xf32>
    %240 = arith.addf %1, %239 : vector<1x64xf32>
    %c8_i32_145 = arith.constant 8 : i32
    %241 = arith.muli %arg0, %c8_i32_145 : i32
    %c7_i32_146 = arith.constant 7 : i32
    %242 = arith.addi %241, %c7_i32_146 : i32
    %243 = arith.index_cast %242 : i32 to index
    %c1_147 = arith.constant 1 : index
    %244 = memref.load %arg1[%243, %c1_147] : memref<8x4xi32, #tpu.memory_space<smem>>
    %245 = arith.index_cast %244 : i32 to index
    %c0_148 = arith.constant 0 : index
    %c0_149 = arith.constant 0 : index
    %246 = vector.load %arg2[%245, %c0_148, %c0_149] : memref<64x1x64xf32, #tpu.memory_space<vmem>>, vector<1x1x64xf32>
    %247 = vector.shape_cast %246 : vector<1x1x64xf32> to vector<1x64xf32>
    %248 = arith.addf %240, %247 : vector<1x64xf32>
    %c8_i32_150 = arith.constant 8 : i32
    %249 = arith.muli %arg0, %c8_i32_150 : i32
    %c7_i32_151 = arith.constant 7 : i32
    %250 = arith.addi %249, %c7_i32_151 : i32
    %251 = arith.index_cast %250 : i32 to index
    %c2_152 = arith.constant 2 : index
    %252 = memref.load %arg1[%251, %c2_152] : memref<8x4xi32, #tpu.memory_space<smem>>
    %253 = arith.index_cast %252 : i32 to index
    %c0_153 = arith.constant 0 : index
    %c0_154 = arith.constant 0 : index
    %254 = vector.load %arg2[%253, %c0_153, %c0_154] : memref<64x1x64xf32, #tpu.memory_space<vmem>>, vector<1x1x64xf32>
    %255 = vector.shape_cast %254 : vector<1x1x64xf32> to vector<1x64xf32>
    %256 = arith.addf %248, %255 : vector<1x64xf32>
    %c8_i32_155 = arith.constant 8 : i32
    %257 = arith.muli %arg0, %c8_i32_155 : i32
    %c7_i32_156 = arith.constant 7 : i32
    %258 = arith.addi %257, %c7_i32_156 : i32
    %259 = arith.index_cast %258 : i32 to index
    %c3_157 = arith.constant 3 : index
    %260 = memref.load %arg1[%259, %c3_157] : memref<8x4xi32, #tpu.memory_space<smem>>
    %261 = arith.index_cast %260 : i32 to index
    %c0_158 = arith.constant 0 : index
    %c0_159 = arith.constant 0 : index
    %262 = vector.load %arg2[%261, %c0_158, %c0_159] : memref<64x1x64xf32, #tpu.memory_space<vmem>>, vector<1x1x64xf32>
    %263 = vector.shape_cast %262 : vector<1x1x64xf32> to vector<1x64xf32>
    %264 = arith.addf %256, %263 : vector<1x64xf32>
    %c7 = arith.constant 7 : index
    %c0_160 = arith.constant 0 : index
    %265 = vector.load %arg6[%c7, %c0_160] : memref<8x64xf32, #tpu.memory_space<vmem>>, vector<1x64xf32>
    tpu.vector_store %arg6[%c7, %c0_160], %264 {strides = array<i32>} : memref<8x64xf32, #tpu.memory_space<vmem>>, vector<1x64xf32>,
    %c0_161 = arith.constant 0 : index
    %c0_162 = arith.constant 0 : index
    %266 = vector.load %arg6[%c0_161, %c0_162] : memref<8x64xf32, #tpu.memory_space<vmem>>, vector<8x64xf32>
    %cst = arith.constant 0.000000e+00 : f32
    %267 = vector.broadcast %cst : f32 to vector<8x64xf32>
    %268 = arith.maximumf %266, %267 : vector<8x64xf32>
    %c0_163 = arith.constant 0 : index
    %c0_164 = arith.constant 0 : index
    %269 = vector.load %arg3[%c0_163, %c0_164] : memref<64x128xf32, #tpu.memory_space<vmem>>, vector<64x128xf32>
    %cst_165 = arith.constant dense<0.000000e+00> : vector<8x128xf32>
    %270 = tpu.matmul %268, %269, %cst_165 {dimension_numbers = #tpu.dot_dimension_numbers<[1], [0], [0], [1], [0, 0, 1, 1], [], []>} : vector<8x64xf32>, vector<64x128xf32>, vector<8x128xf32> -> vector<8x128xf32>
    %c0_166 = arith.constant 0 : index
    %c0_167 = arith.constant 0 : index
    %271 = vector.load %arg4[%c0_166, %c0_167] : memref<1x128xf32, #tpu.memory_space<vmem>>, vector<1x128xf32>
    %272 = vector.broadcast %271 : vector<1x128xf32> to vector<8x128xf32>
    %273 = arith.addf %270, %272 : vector<8x128xf32>
    %cst_168 = arith.constant dense<0xFF800000> : vector<8xf32>
    %274 = vector.multi_reduction <maximumf>, %273, %cst_168 [1] : vector<8x128xf32> to vector<8xf32>
    %275 = vector.shape_cast %274 : vector<8xf32> to vector<8x1xf32>
    %276 = vector.broadcast %275 : vector<8x1xf32> to vector<8x128xf32>
    %277 = arith.subf %273, %276 : vector<8x128xf32>
    %278 = math.exp %277 : vector<8x128xf32>
    %cst_169 = arith.constant dense<0.000000e+00> : vector<8xf32>
    %279 = vector.multi_reduction <add>, %278, %cst_169 [1] : vector<8x128xf32> to vector<8xf32>
    %280 = vector.shape_cast %279 : vector<8xf32> to vector<8x1xf32>
    %281 = math.log %280 : vector<8x1xf32>
    %282 = arith.addf %275, %281 : vector<8x1xf32>
    %283 = vector.broadcast %282 : vector<8x1xf32> to vector<8x128xf32>
    %284 = arith.subf %273, %283 : vector<8x128xf32>
    %c0_170 = arith.constant 0 : index
    %c0_171 = arith.constant 0 : index
    %285 = vector.load %arg5[%c0_170, %c0_171] : memref<8x128xf32, #tpu.memory_space<vmem>>, vector<8x128xf32>
    tpu.vector_store %arg5[%c0_170, %c0_171], %284 {strides = array<i32>} : memref<8x128xf32, #tpu.memory_space<vmem>>, vector<8x128xf32>,
    return
  }
  func.func @transform_0(%arg0: i32, %arg1: memref<8x4xi32, #tpu.memory_space<smem>>) -> (i32, i32, i32) {
    %c0_i32 = arith.constant 0 : i32
    %c0_i32_0 = arith.constant 0 : i32
    %c0_i32_1 = arith.constant 0 : i32
    %c0_i32_2 = arith.constant 0 : i32
    return %c0_i32, %c0_i32_0, %c0_i32_1 : i32, i32, i32
  }
  func.func @transform_1(%arg0: i32, %arg1: memref<8x4xi32, #tpu.memory_space<smem>>) -> (i32, i32) {
    %c0_i32 = arith.constant 0 : i32
    %c0_i32_0 = arith.constant 0 : i32
    %c0_i32_1 = arith.constant 0 : i32
    return %c0_i32, %c0_i32_0 : i32, i32
  }
  func.func @transform_2(%arg0: i32, %arg1: memref<8x4xi32, #tpu.memory_space<smem>>) -> (i32, i32) {
    %c0_i32 = arith.constant 0 : i32
    %c0_i32_0 = arith.constant 0 : i32
    %c0_i32_1 = arith.constant 0 : i32
    return %c0_i32, %c0_i32_0 : i32, i32
  }
  func.func @transform_3(%arg0: i32, %arg1: memref<8x4xi32, #tpu.memory_space<smem>>) -> (i32, i32) {
    %c0_i32 = arith.constant 0 : i32
    %c0_i32_0 = arith.constant 0 : i32
    return %arg0, %c0_i32 : i32, i32
  }
}

</mosaic_0001>

<llo_original>
// kernel: tpu_custom_call.1
$region0: #{tpu_custom_call.1}
  #allocation0 [shape = 'u32[]', space=smem, size = 0x4, offset = 0x4, fixed_abs, tag = 'smem constant byte address 0x4 - core index']
  #allocation1 [shape = 'u32[144,128]{1,0:T(1,128)}', space=vmem, size = 0x12000, scoped, tag = 'internal scratch']
  #allocation2 [shape = 'f32[8,64]{1,0:T(8,128)}', space=vmem, size = 0x1000, scoped, tag = 'scratch operand']
  #allocation3 [shape = 's32[1]{0}', space=sflag, size = 0x4, scoped, tag = 'scoped memory for tpu_custom_call.1']
  #allocation4 [shape = 'u8[4096]{0}', space=smem, size = 0x1000, scoped, tag = 'prefetched SMEM operand 0']
  %s0 = inlined_call_operand.vmem [shape: s32[8,4], index: 0, kind: input, shape index: {}]
  %s1 = inlined_call_operand.hbm [shape: f32[64,1,64], index: 1, kind: input, shape index: {}]
  %s2 = inlined_call_operand.hbm [shape: f32[64,128], index: 2, kind: input, shape index: {}]
  %s3 = inlined_call_operand.vmem [shape: f32[1,128], index: 3, kind: input, shape index: {}]
  %s4 = inlined_call_operand.hbm [shape: f32[8,128], index: 4, kind: output, shape index: {}]
  %s5 = sld [smem:[#allocation0]]
  $region30: #{tpu_custom_call.1} parent=0
    _
  %s7 = ssub.s32 1, %s5
  %s8 = scalar_select 0, %s7, %s5
  %s9 = sshll.u32 %s0, 4
  %s10 = int_to_ptr.vmem [resolvable:$true] %s9
  %12 = dma.vmem_to_smem %s10, 128, [#allocation4], [#allocation3]
  %13 = dma.done [#allocation3], 128
  %14 = sfence
  $region1: #{tpu_custom_call.1} parent=0
    #allocation5 [shape = 'u8[32768]{0}', space=vmem, size = 0x8000, scoped, tag = 'input window, operand 1, single buffered']
    #allocation6 [shape = 's32[1]{0}', space=sflag, size = 0x4, scoped, tag = 'scoped memory for tpu_custom_call.1']
    #allocation7 [shape = 's32[1]{0}', space=sflag, size = 0x4, scoped, tag = 'scoped memory for tpu_custom_call.1']
    #allocation8 [shape = 'u8[32768]{0}', space=vmem, size = 0x8000, scoped, tag = 'input window, operand 2, single buffered']
    #allocation9 [shape = 's32[1]{0}', space=sflag, size = 0x4, scoped, tag = 'scoped memory for tpu_custom_call.1']
    #allocation10 [shape = 'u8[4096]{0}', space=vmem, size = 0x1000, scoped, tag = 'output window, operand 0, single buffered']
    %15 = vsyncpa [#allocation6], 0
    %16 = vsyncpa [#allocation9], 0
    %17 = vsyncpa [#allocation7], 0
    // Predicated region
    $region2: #{tpu_custom_call.1} parent=1 // pred_check
      _
    $region3: #{tpu_custom_call.1} parent=1 // pred_check_branch
      %19 = sbr.rel (0) target = $region5
    $region4: #{tpu_custom_call.1} parent=1 // pred_region
      %s21 = ssub.s32 1024, 1024
      %22 = vsyncadd [#allocation6], %s21
      %s23 = sshll.u32 [#allocation5], 4
      %s24 = int_to_ptr.vmem [resolvable:$true] %s23
      %29 = dma.hbm_to_vmem [thread:$0]  %s1, 1024, %s24, [#allocation6], 16, 16, 1
    $region5: #{tpu_custom_call.1} parent=1 // pred_fallthru
      _
    // Predicated region
    $region6: #{tpu_custom_call.1} parent=1 // pred_check
      _
    $region7: #{tpu_custom_call.1} parent=1 // pred_check_branch
      %31 = sbr.rel (0) target = $region9
    $region8: #{tpu_custom_call.1} parent=1 // pred_region
      %s33 = ssub.s32 1024, 1024
      %34 = vsyncadd [#allocation9], %s33
      %s35 = sshll.u32 [#allocation8], 4
      %s36 = int_to_ptr.vmem [resolvable:$true] %s35
      %41 = dma.hbm_to_vmem [thread:$0]  %s2, 1024, %s36, [#allocation9], 128, 128, 8
    $region9: #{tpu_custom_call.1} parent=1 // pred_fallthru
      _
    // Predicated region
    $region10: #{tpu_custom_call.1} parent=1 // pred_check
      _
    $region11: #{tpu_custom_call.1} parent=1 // pred_check_branch
      %43 = sbr.rel (0) target = $region13
    $region12: #{tpu_custom_call.1} parent=1 // pred_region
      _
    $region13: #{tpu_custom_call.1} parent=1 // pred_fallthru
      _
    // Predicated region
    $region14: #{tpu_custom_call.1} parent=1 // pred_check
      _
    $region15: #{tpu_custom_call.1} parent=1 // pred_check_branch
      %45 = sbr.rel (0) target = $region17
    $region16: #{tpu_custom_call.1} parent=1 // pred_region
      %46 = dma.done [#allocation6], 1024
    $region17: #{tpu_custom_call.1} parent=1 // pred_fallthru
      _
    // Predicated region
    $region18: #{tpu_custom_call.1} parent=1 // pred_check
      _
    $region19: #{tpu_custom_call.1} parent=1 // pred_check_branch
      %48 = sbr.rel (0) target = $region21
    $region20: #{tpu_custom_call.1} parent=1 // pred_region
      %49 = dma.done [#allocation9], 1024
    $region21: #{tpu_custom_call.1} parent=1 // pred_fallthru
      _
    %s50 = scalar_lea.vmem [#allocation5], 63
    %v51 = vld [vmem:[%s50] sm:$0x1]
    %s52 = smul.u32 0, 8
    %s53 = smul.u32 %s52, 128
    %s54 = sld [smem:[#allocation4 + %s53]]
    %s55 = scalar_lea.vmem [#allocation5], %s54
    %v56 = vld [vmem:[%s55] sm:$0x1]
    %v57 = vadd.f32 %v51, %v56
    %s58 = sadd.s32 %s53, 1
    %s59 = sld [smem:[#allocation4 + %s58]]
    %s60 = scalar_lea.vmem [#allocation5], %s59
    %v61 = vld [vmem:[%s60] sm:$0x1]
    %v62 = vadd.f32 %v57, %v61
    %s63 = sadd.s32 %s53, 2
    %s64 = sld [smem:[#allocation4 + %s63]]
    %s65 = scalar_lea.vmem [#allocation5], %s64
    %v66 = vld [vmem:[%s65] sm:$0x1]
    %v67 = vadd.f32 %v62, %v66
    %s68 = sadd.s32 %s53, 3
    %s69 = sld [smem:[#allocation4 + %s68]]
    %s70 = scalar_lea.vmem [#allocation5], %s69
    %v71 = vld [vmem:[%s70] sm:$0x1]
    %v72 = vadd.f32 %v67, %v71
    %vm73 = vcmask 516096
    %74 = vst.msk [vmem:[#allocation2] sm:$0x1] %vm73, %v72
    %s75 = sadd.s32 %s52, 1
    %s76 = smul.u32 %s75, 128
    %s77 = sld [smem:[#allocation4 + %s76]]
    %s78 = scalar_lea.vmem [#allocation5], %s77
    %v79 = vld [vmem:[%s78] sm:$0x1]
    %v80 = vadd.f32 %v51, %v79
    %s81 = sadd.s32 %s76, 1
    %s82 = sld [smem:[#allocation4 + %s81]]
    %s83 = scalar_lea.vmem [#allocation5], %s82
    %v84 = vld [vmem:[%s83] sm:$0x1]
    %v85 = vadd.f32 %v80, %v84
    %s86 = sadd.s32 %s76, 2
    %s87 = sld [smem:[#allocation4 + %s86]]
    %s88 = scalar_lea.vmem [#allocation5], %s87
    %v89 = vld [vmem:[%s88] sm:$0x1]
    %v90 = vadd.f32 %v85, %v89
    %s91 = sadd.s32 %s76, 3
    %s92 = sld [smem:[#allocation4 + %s91]]
    %s93 = scalar_lea.vmem [#allocation5], %s92
    %v94 = vld [vmem:[%s93] sm:$0x1]
    %v95 = vadd.f32 %v90, %v94
    %96 = vst.msk [vmem:[#allocation2 + $0x1] sm:$0x1] %vm73, %v95
    %s97 = sadd.s32 %s52, 2
    %s98 = smul.u32 %s97, 128
    %s99 = sld [smem:[#allocation4 + %s98]]
    %s100 = scalar_lea.vmem [#allocation5], %s99
    %v101 = vld [vmem:[%s100] sm:$0x1]
    %v102 = vadd.f32 %v51, %v101
    %s103 = sadd.s32 %s98, 1
    %s104 = sld [smem:[#allocation4 + %s103]]
    %s105 = scalar_lea.vmem [#allocation5], %s104
    %v106 = vld [vmem:[%s105] sm:$0x1]
    %v107 = vadd.f32 %v102, %v106
    %s108 = sadd.s32 %s98, 2
    %s109 = sld [smem:[#allocation4 + %s108]]
    %s110 = scalar_lea.vmem [#allocation5], %s109
    %v111 = vld [vmem:[%s110] sm:$0x1]
    %v112 = vadd.f32 %v107, %v111
    %s113 = sadd.s32 %s98, 3
    %s114 = sld [smem:[#allocation4 + %s113]]
    %s115 = scalar_lea.vmem [#allocation5], %s114
    %v116 = vld [vmem:[%s115] sm:$0x1]
    %v117 = vadd.f32 %v112, %v116
    %118 = vst.msk [vmem:[#allocation2 + $0x2] sm:$0x1] %vm73, %v117
    %s119 = sadd.s32 %s52, 3
    %s120 = smul.u32 %s119, 128
    %s121 = sld [smem:[#allocation4 + %s120]]
    %s122 = scalar_lea.vmem [#allocation5], %s121
    %v123 = vld [vmem:[%s122] sm:$0x1]
    %v124 = vadd.f32 %v51, %v123
    %s125 = sadd.s32 %s120, 1
    %s126 = sld [smem:[#allocation4 + %s125]]
    %s127 = scalar_lea.vmem [#allocation5], %s126
    %v128 = vld [vmem:[%s127] sm:$0x1]
    %v129 = vadd.f32 %v124, %v128
    %s130 = sadd.s32 %s120, 2
    %s131 = sld [smem:[#allocation4 + %s130]]
    %s132 = scalar_lea.vmem [#allocation5], %s131
    %v133 = vld [vmem:[%s132] sm:$0x1]
    %v134 = vadd.f32 %v129, %v133
    %s135 = sadd.s32 %s120, 3
    %s136 = sld [smem:[#allocation4 + %s135]]
    %s137 = scalar_lea.vmem [#allocation5], %s136
    %v138 = vld [vmem:[%s137] sm:$0x1]
    %v139 = vadd.f32 %v134, %v138
    %140 = vst.msk [vmem:[#allocation2 + $0x3] sm:$0x1] %vm73, %v139
    %s141 = sadd.s32 %s52, 4
    %s142 = smul.u32 %s141, 128
    %s143 = sld [smem:[#allocation4 + %s142]]
    %s144 = scalar_lea.vmem [#allocation5], %s143
    %v145 = vld [vmem:[%s144] sm:$0x1]
    %v146 = vadd.f32 %v51, %v145
    %s147 = sadd.s32 %s142, 1
    %s148 = sld [smem:[#allocation4 + %s147]]
    %s149 = scalar_lea.vmem [#allocation5], %s148
    %v150 = vld [vmem:[%s149] sm:$0x1]
    %v151 = vadd.f32 %v146, %v150
    %s152 = sadd.s32 %s142, 2
    %s153 = sld [smem:[#allocation4 + %s152]]
    %s154 = scalar_lea.vmem [#allocation5], %s153
    %v155 = vld [vmem:[%s154] sm:$0x1]
    %v156 = vadd.f32 %v151, %v155
    %s157 = sadd.s32 %s142, 3
    %s158 = sld [smem:[#allocation4 + %s157]]
    %s159 = scalar_lea.vmem [#allocation5], %s158
    %v160 = vld [vmem:[%s159] sm:$0x1]
    %v161 = vadd.f32 %v156, %v160
    %162 = vst.msk [vmem:[#allocation2 + $0x4] sm:$0x1] %vm73, %v161
    %s163 = sadd.s32 %s52, 5
    %s164 = smul.u32 %s163, 128
    %s165 = sld [smem:[#allocation4 + %s164]]
    %s166 = scalar_lea.vmem [#allocation5], %s165
    %v167 = vld [vmem:[%s166] sm:$0x1]
    %v168 = vadd.f32 %v51, %v167
    %s169 = sadd.s32 %s164, 1
    %s170 = sld [smem:[#allocation4 + %s169]]
    %s171 = scalar_lea.vmem [#allocation5], %s170
    %v172 = vld [vmem:[%s171] sm:$0x1]
    %v173 = vadd.f32 %v168, %v172
    %s174 = sadd.s32 %s164, 2
    %s175 = sld [smem:[#allocation4 + %s174]]
    %s176 = scalar_lea.vmem [#allocation5], %s175
    %v177 = vld [vmem:[%s176] sm:$0x1]
    %v178 = vadd.f32 %v173, %v177
    %s179 = sadd.s32 %s164, 3
    %s180 = sld [smem:[#allocation4 + %s179]]
    %s181 = scalar_lea.vmem [#allocation5], %s180
    %v182 = vld [vmem:[%s181] sm:$0x1]
    %v183 = vadd.f32 %v178, %v182
    %184 = vst.msk [vmem:[#allocation2 + $0x5] sm:$0x1] %vm73, %v183
    %s185 = sadd.s32 %s52, 6
    %s186 = smul.u32 %s185, 128
    %s187 = sld [smem:[#allocation4 + %s186]]
    %s188 = scalar_lea.vmem [#allocation5], %s187
    %v189 = vld [vmem:[%s188] sm:$0x1]
    %v190 = vadd.f32 %v51, %v189
    %s191 = sadd.s32 %s186, 1
    %s192 = sld [smem:[#allocation4 + %s191]]
    %s193 = scalar_lea.vmem [#allocation5], %s192
    %v194 = vld [vmem:[%s193] sm:$0x1]
    %v195 = vadd.f32 %v190, %v194
    %s196 = sadd.s32 %s186, 2
    %s197 = sld [smem:[#allocation4 + %s196]]
    %s198 = scalar_lea.vmem [#allocation5], %s197
    %v199 = vld [vmem:[%s198] sm:$0x1]
    %v200 = vadd.f32 %v195, %v199
    %s201 = sadd.s32 %s186, 3
    %s202 = sld [smem:[#allocation4 + %s201]]
    %s203 = scalar_lea.vmem [#allocation5], %s202
    %v204 = vld [vmem:[%s203] sm:$0x1]
    %v205 = vadd.f32 %v200, %v204
    %206 = vst.msk [vmem:[#allocation2 + $0x6] sm:$0x1] %vm73, %v205
    %s207 = sadd.s32 %s52, 7
    %s208 = smul.u32 %s207, 128
    %s209 = sld [smem:[#allocation4 + %s208]]
    %s210 = scalar_lea.vmem [#allocation5], %s209
    %v211 = vld [vmem:[%s210] sm:$0x1]
    %v212 = vadd.f32 %v51, %v211
    %s213 = sadd.s32 %s208, 1
    %s214 = sld [smem:[#allocation4 + %s213]]
    %s215 = scalar_lea.vmem [#allocation5], %s214
    %v216 = vld [vmem:[%s215] sm:$0x1]
    %v217 = vadd.f32 %v212, %v216
    %s218 = sadd.s32 %s208, 2
    %s219 = sld [smem:[#allocation4 + %s218]]
    %s220 = scalar_lea.vmem [#allocation5], %s219
    %v221 = vld [vmem:[%s220] sm:$0x1]
    %v222 = vadd.f32 %v217, %v221
    %s223 = sadd.s32 %s208, 3
    %s224 = sld [smem:[#allocation4 + %s223]]
    %s225 = scalar_lea.vmem [#allocation5], %s224
    %v226 = vld [vmem:[%s225] sm:$0x1]
    %v227 = vadd.f32 %v222, %v226
    %228 = vst.msk [vmem:[#allocation2 + $0x7] sm:$0x1] %vm73, %v227
    %v229 = vld [vmem:[#allocation2] sm:$0xff]
    %v230 = vmax.f32 %v229, 0.0
    %v231 = vld [vmem:[#allocation8] sm:$0xff]
    %v232 = vld [vmem:[#allocation8 + $0x8] sm:$0xff]
    %v233 = vld [vmem:[#allocation8 + $0x10] sm:$0xff]
    %v234 = vld [vmem:[#allocation8 + $0x18] sm:$0xff]
    %v235 = vld [vmem:[#allocation8 + $0x20] sm:$0xff]
    %v236 = vld [vmem:[#allocation8 + $0x28] sm:$0xff]
    %v237 = vld [vmem:[#allocation8 + $0x30] sm:$0xff]
    %v238 = vld [vmem:[#allocation8 + $0x38] sm:$0xff]
    %v239 = vld [vmem:[%s3] sm:$0x1]
    %v241 = vlaneseq
    %v242 = vshrl.u32 %v241, 7
    %v243 = vsub.s32 0, %v242
    %v244 = vrot.slane %v239, %v243
    %vm246 = vcmask 523264
    %v248 = vsel %vm246, %v230, 0
    %250 = vmatprep.subr.mxu0 0.0
    %251 = vmatpush1.msra.mxu0 %v231
    %252 = vmatprep.subr.mxu0 0.0
    %253 = vmatpush1.msra.mxu0 %v232
    %254 = vmatprep.subr.mxu0 0.0
    %255 = vmatpush1.msra.mxu0 %v233
    %256 = vmatprep.subr.mxu0 0.0
    %257 = vmatpush1.msra.mxu0 %v234
    %258 = vmatprep.subr.mxu0 0.0
    %259 = vmatpush1.msra.mxu0 %v235
    %260 = vmatprep.subr.mxu0 0.0
    %261 = vmatpush1.msra.mxu0 %v236
    %262 = vmatprep.subr.mxu0 0.0
    %263 = vmatpush1.msra.mxu0 %v237
    %264 = vmatprep.subr.mxu0 0.0
    %265 = vmatpush1.msra.mxu0 %v238
    %266 = vmatprep.subr.mxu0 0.0
    %267 = vmatpush1.msra.mxu0 0.0
    %268 = vmatprep.subr.mxu0 0.0
    %269 = vmatpush1.msra.mxu0 0.0
    %270 = vmatprep.subr.mxu0 0.0
    %271 = vmatpush1.msra.mxu0 0.0
    %272 = vmatprep.subr.mxu0 0.0
    %273 = vmatpush1.msra.mxu0 0.0
    %274 = vmatprep.subr.mxu0 0.0
    %275 = vmatpush1.msra.mxu0 0.0
    %276 = vmatprep.subr.mxu0 0.0
    %277 = vmatpush1.msra.mxu0 0.0
    %278 = vmatprep.subr.mxu0 0.0
    %279 = vmatpush1.msra.mxu0 0.0
    %280 = vmatprep.subr.mxu0 0.0
    %281 = vmatpush1.msra.mxu0 0.0
    %282 = vmatprep.subr.mxu0 0.0
    %283 = vmatpush1.msra.mxu0 0.0
    %284 = vmatprep.subr.mxu0 0.0
    %285 = vmatpush1.msra.mxu0 0.0
    %286 = vmatprep.subr.mxu0 0.0
    %287 = vmatpush1.msra.mxu0 0.0
    %288 = vmatprep.subr.mxu0 0.0
    %289 = vmatpush1.msra.mxu0 0.0
    %290 = vmatprep.subr.mxu0 0.0
    %291 = vmatpush1.msra.mxu0 0.0
    %292 = vmatprep.subr.mxu0 0.0
    %293 = vmatpush1.msra.mxu0 0.0
    %294 = vmatprep.subr.mxu0 0.0
    %295 = vmatpush1.msra.mxu0 0.0
    %296 = vmatprep.subr.mxu0 0.0
    %297 = vmatpush1.msra.mxu0 0.0
    %298 = vmatprep.subr.mxu0 0.0
    %299 = vmatpush1.msra.mxu0 0.0
    %300 = vmatprep.subr.mxu0 0.0
    %301 = vmatpush1.msra.mxu0 0.0
    %302 = vmatprep.subr.mxu0 0.0
    %303 = vmatpush1.msra.mxu0 0.0
    %304 = vmatprep.subr.mxu0 0.0
    %305 = vmatpush1.msra.mxu0 0.0
    %306 = vmatprep.subr.mxu0 0.0
    %307 = vmatpush1.msra.mxu0 0.0
    %308 = vmatprep.subr.mxu0 0.0
    %309 = vmatpush1.msra.mxu0 0.0
    %310 = vmatprep.subr.mxu0 0.0
    %311 = vmatpush1.msra.mxu0 0.0
    %312 = vmatprep.subr.mxu0 0.0
    %313 = vmatpush1.msra.mxu0 0.0
    %314 = vmatprep.mubr.f32.mxu0 0.0
    %315 = vmatmul.mubr.f32.gmra.mrb[0].mxu0 %v248
    %v316 = vpop.f32.mrb[0].mxu0
    %v317 = vadd.f32 %v244, %v316
    %v318 = vpop.f32.mrb[0].mxu0
    %319 = vdwg.mxu0
    %320 = vmax.xlane.f32.xlu0 %v317
    %v321 = vpop.xlane.xlu0 %320
    %v322 = vsub.f32 %v317, %v321
    %v323 = vmul.f32 %v322, 1.442695
    %v324 = vpow.pop %v323
    %325 = vadd.xlane.f32.xlu0 %v324
    %v326 = vpop.xlane.xlu0 %325
    %v327 = vlog2.pop %v326
    %v328 = vmul.f32 %v327, 0.6931472
    %v329 = vadd.f32 %v321, %v328
    %v330 = vsub.f32 %v317, %v329
    %331 = vst [vmem:[#allocation10] sm:$0xff] %v330
    // Predicated region
    $region22: #{tpu_custom_call.1} parent=1 // pred_check
      _
    $region23: #{tpu_custom_call.1} parent=1 // pred_check_branch
      %333 = sbr.rel (0) target = $region25
    $region24: #{tpu_custom_call.1} parent=1 // pred_region
      %s335 = ssub.s32 128, 128
      %336 = vsyncadd [#allocation7], %s335
      %s338 = sshll.u32 [#allocation10], 4
      %s339 = int_to_ptr.vmem [resolvable:$true] %s338
      %341 = dma.vmem_to_hbm [thread:$0]  %s339, 128, %s4, [#allocation7]
    $region25: #{tpu_custom_call.1} parent=1 // pred_fallthru
      _
    // Predicated region
    $region26: #{tpu_custom_call.1} parent=1 // pred_check
      _
    $region27: #{tpu_custom_call.1} parent=1 // pred_check_branch
      %343 = sbr.rel (0) target = $region29
    $region28: #{tpu_custom_call.1} parent=1 // pred_region
      %344 = dma.done [#allocation7], 128
    $region29: #{tpu_custom_call.1} parent=1 // pred_fallthru
      _
    %345 = vsyncpa [#allocation6], 1
    %346 = vsyncpa [#allocation9], 1
    %347 = vsyncpa [#allocation7], 1

</llo_original>
